<compile_context>
chip_gen: v7x
topology: tpu7x:2x2x1
jax: 0.10.0
libtpu: 0.0.40
codegen_flags: <defaults>
</compile_context>

<pallas_src>
import jax
import jax.numpy as jnp
from jax.experimental import pallas as pl
from jax.experimental.pallas import tpu as pltpu

_HALO = 128  # lane-aligned halo slab width (must be >= kernel_size - 1)


def _round_up(a: int, b: int) -> int:
    return (a + b - 1) // b * b


def _make_kernel(k_taps: int):
    base = _HALO - (k_taps - 1)

    def kernel(w_ref, b_ref, x_ref, h_ref, o_ref, xs_ref):
        # xs_ref: (C_in, _HALO + tl) scratch. Columns [_HALO:) hold this tile,
        # columns [base:_HALO) hold the causal halo from the previous tile.
        xs_ref[:, :_HALO] = h_ref[...]
        xs_ref[:, _HALO:] = x_ref[...]

        c_in = x_ref.shape[0]
        cop, tl = o_ref.shape
        acc = jnp.zeros((cop, tl), jnp.float32)
        for k in range(k_taps):
            xk = xs_ref[:, base + k:base + k + tl]           # (C_in, tl)
            wk = w_ref[k]                                     # (cop, C_in)
            if c_in == 1:
                # Outer product: cheap VPU broadcast multiply-accumulate (f32).
                acc = acc + wk.astype(jnp.float32) * xk.astype(jnp.float32)
            else:
                acc = acc + jnp.dot(wk, xk, preferred_element_type=jnp.float32)
        acc = acc + b_ref[...]                                # (cop, 1) broadcast
        o_ref[...] = jnp.tanh(acc).astype(o_ref.dtype)

    return kernel


def context_embedding(x, weight, bias, *, kernel_size, lane_tile=8192,
                      compute_dtype=jnp.bfloat16, out_dtype=None,
                      vmem_budget_bytes=36 * 1024 * 1024):
    """tanh(CausalConv1d(x)): x (N, C_in, L) -> (N, C_out, L)."""
    n, c_in, seq_len = x.shape
    c_out, c_in_w, k_taps = weight.shape
    assert c_in_w == c_in and k_taps == kernel_size
    assert kernel_size - 1 <= _HALO
    out_dtype = x.dtype if out_dtype is None else jnp.dtype(out_dtype)
    compute_dtype = jnp.dtype(compute_dtype)

    cdt_b = compute_dtype.itemsize
    out_b = jnp.dtype(out_dtype).itemsize
    sub = 16 if min(cdt_b, out_b) < 4 else 8          # sublane tile for 16-bit
    cop = _round_up(c_out, sub)

    # Lane tile: fat (amortizes per-step pipeline overhead), multiple of 128,
    # capped so pipelined buffers + f32 accumulator + temporaries fit in VMEM.
    per_lane = (2 * (c_in * cdt_b + cop * out_b)      # double-buffered in/out
                + cop * 4                              # f32 accumulator value
                + (k_taps + 2) * c_in * 4)             # window/tap temporaries
    tl_cap = max(128, (vmem_budget_bytes // per_lane) // 128 * 128)
    tl_req = max(128, (int(lane_tile) // 128) * 128)
    tl = min(tl_req, tl_cap, _round_up(seq_len, 128))
    l_pad = _round_up(seq_len, tl)
    num_tiles = l_pad // tl
    # Keep >= 2 grid steps when possible so both v7x TensorCores get work.
    if n * num_tiles < 2 and tl >= 256:
        tl = (tl // 2) // 128 * 128
        l_pad = _round_up(seq_len, tl)
        num_tiles = l_pad // tl

    # ---- wrapper-side prep (one cast/pad pass over x + tiny side arrays) ----
    x_lp = jnp.pad(x.astype(compute_dtype),
                   ((0, 0), (0, 0), (0, l_pad - seq_len)))   # (N, C_in, L_pad)

    kh = kernel_size - 1
    tiles = x_lp.reshape(n, c_in, num_tiles, tl)
    tails = tiles[:, :, :, tl - kh:]                         # (N, C_in, nt, kh)
    halos = jnp.concatenate(
        [jnp.zeros((n, c_in, 1, kh), compute_dtype),
         tails[:, :, :num_tiles - 1, :]], axis=2)            # halo of tile j
    halos = jnp.pad(halos, ((0, 0), (0, 0), (0, 0), (_HALO - kh, 0)))
    x_halo = halos.reshape(n, c_in, num_tiles * _HALO)       # (N, C_in, nt*128)

    w_t = jnp.pad(jnp.transpose(weight, (2, 0, 1)).astype(compute_dtype),
                  ((0, 0), (0, cop - c_out), (0, 0)))        # (K, cop, C_in)
    bias_c = jnp.pad(bias.astype(jnp.float32),
                     (0, cop - c_out))[:, None]              # (cop, 1), f32

    cost = pl.CostEstimate(
        flops=2 * n * l_pad * cop * c_in * k_taps,
        transcendentals=n * cop * l_pad,
        bytes_accessed=(n * c_in * (l_pad + num_tiles * _HALO) * cdt_b
                        + k_taps * cop * c_in * cdt_b + cop * 4
                        + n * cop * l_pad * out_b))

    out = pl.pallas_call(
        _make_kernel(k_taps),
        out_shape=jax.ShapeDtypeStruct((n, cop, l_pad), out_dtype),
        grid_spec=pltpu.PrefetchScalarGridSpec(
            num_scalar_prefetch=0,
            grid=(n, num_tiles),
            in_specs=[
                pl.BlockSpec((k_taps, cop, c_in), lambda b, j: (0, 0, 0)),  # W
                pl.BlockSpec((cop, 1), lambda b, j: (0, 0)),                # bias
                pl.BlockSpec((None, c_in, tl), lambda b, j: (b, 0, j)),     # x tile
                pl.BlockSpec((None, c_in, _HALO), lambda b, j: (b, 0, j)),  # halo
            ],
            out_specs=pl.BlockSpec((None, cop, tl), lambda b, j: (b, 0, j)),
            scratch_shapes=[pltpu.VMEM((c_in, _HALO + tl), compute_dtype)],
        ),
        compiler_params=pltpu.CompilerParams(
            dimension_semantics=("parallel", "parallel"),
            vmem_limit_bytes=48 * 1024 * 1024,
        ),
        cost_estimate=cost,
    )(w_t, bias_c, x_lp, x_halo)

    if cop != c_out or l_pad != seq_len:
        out = out[:, :c_out, :seq_len]
    return out


if __name__ == "__main__":
    def reference(x, weight, bias, k):
        n, _, L = x.shape
        c_out = weight.shape[0]
        x_pad = jnp.pad(x, ((0, 0), (0, 0), (k - 1, 0)))
        r = jnp.zeros((n, c_out, L), jnp.float32)
        for t in range(k):
            r = r + jnp.einsum("oc,ncl->nol", weight[:, :, t], x_pad[:, :, t:t + L])
        return jnp.tanh(r + bias[None, :, None])

    N, C_IN, L, C_OUT, K = 2, 1, 16, 32, 5
    key = jax.random.PRNGKey(0)
    kx, kw, kb, kx2 = jax.random.split(key, 4)

    x = jax.random.normal(kx, (N, C_IN, L), dtype=jnp.float32)
    bound = 1.0 / ((C_IN * K) ** 0.5)   # PyTorch Conv1d-style init bounds
    weight = jax.random.uniform(kw, (C_OUT, C_IN, K), jnp.float32, -bound, bound)
    bias = jax.random.uniform(kb, (C_OUT,), jnp.float32, -bound, bound)
    ref = reference(x, weight, bias, K)

    # Exact path (f32 compute) -- strict check.
    out = jax.block_until_ready(
        context_embedding(x, weight, bias, kernel_size=K,
                          compute_dtype=jnp.float32))
    assert out.shape == (N, C_OUT, L)
    assert jnp.allclose(out, ref, atol=1e-5, rtol=1e-5)

    # Fast path (bf16 inputs, f32 accumulate + f32 output) -- loose check.
    out_bf = jax.block_until_ready(
        context_embedding(x, weight, bias, kernel_size=K))
    assert out_bf.shape == (N, C_OUT, L)
    assert jnp.allclose(out_bf, ref, atol=5e-2, rtol=0)

    # Multi-tile case: exercises the cross-tile causal halo path (f32, strict).
    L2 = 300
    x2 = jax.random.normal(kx2, (N, C_IN, L2), dtype=jnp.float32)
    ref2 = reference(x2, weight, bias, K)
    out2 = jax.block_until_ready(
        context_embedding(x2, weight, bias, kernel_size=K, lane_tile=128,
                          compute_dtype=jnp.float32))
    assert out2.shape == (N, C_OUT, L2)
    assert jnp.allclose(out2, ref2, atol=1e-5, rtol=1e-5)

    print("KERNEL_OK")
</pallas_src>

<mosaic_0001>
module attributes {stable_mosaic.version = 11 : i64} {
  func.func @kernel(%arg0: i32, %arg1: i32, %arg2: memref<5x32x1xf32, #tpu.memory_space<vmem>>, %arg3: memref<32x1xf32, #tpu.memory_space<vmem>>, %arg4: memref<1x1x128xf32, #tpu.memory_space<vmem>>, %arg5: memref<1x1x128xf32, #tpu.memory_space<vmem>>, %arg6: memref<1x32x128xf32, #tpu.memory_space<vmem>>, %arg7: memref<1x256xf32, #tpu.memory_space<vmem>>) attributes {dimension_semantics = [#tpu.dimension_semantics<parallel>, #tpu.dimension_semantics<parallel>], iteration_bounds = array<i64: 2, 1>, scalar_prefetch = 0 : i64, scratch_operands = 1 : i64, tpu.core_type = #tpu.core_type<tc>, window_params = [{pipeline_mode = #tpu.pipeline_mode<synchronous>, transform_indices = @transform_0, window_bounds = array<i64: 5, 32, 1>}, {pipeline_mode = #tpu.pipeline_mode<synchronous>, transform_indices = @transform_1, window_bounds = array<i64: 32, 1>}, {transform_indices = @transform_2, window_bounds = array<i64: 1, 1, 128>}, {transform_indices = @transform_3, window_bounds = array<i64: 1, 1, 128>}, {transform_indices = @transform_4, window_bounds = array<i64: 1, 32, 128>}]} {
    %c0 = arith.constant 0 : index
    %c0_0 = arith.constant 0 : index
    %c0_1 = arith.constant 0 : index
    %0 = vector.load %arg5[%c0, %c0_0, %c0_1] : memref<1x1x128xf32, #tpu.memory_space<vmem>>, vector<1x1x128xf32>
    %1 = vector.shape_cast %0 : vector<1x1x128xf32> to vector<1x128xf32>
    %c0_2 = arith.constant 0 : index
    %c0_3 = arith.constant 0 : index
    %2 = vector.load %arg7[%c0_2, %c0_3] : memref<1x256xf32, #tpu.memory_space<vmem>>, vector<1x128xf32>
    tpu.vector_store %arg7[%c0_2, %c0_3], %1 {strides = array<i32>} : memref<1x256xf32, #tpu.memory_space<vmem>>, vector<1x128xf32>,
    %c0_4 = arith.constant 0 : index
    %c0_5 = arith.constant 0 : index
    %c0_6 = arith.constant 0 : index
    %3 = vector.load %arg4[%c0_4, %c0_5, %c0_6] : memref<1x1x128xf32, #tpu.memory_space<vmem>>, vector<1x1x128xf32>
    %4 = vector.shape_cast %3 : vector<1x1x128xf32> to vector<1x128xf32>
    %c0_7 = arith.constant 0 : index
    %c128 = arith.constant 128 : index
    %5 = vector.load %arg7[%c0_7, %c128] : memref<1x256xf32, #tpu.memory_space<vmem>>, vector<1x128xf32>
    tpu.vector_store %arg7[%c0_7, %c128], %4 {strides = array<i32>} : memref<1x256xf32, #tpu.memory_space<vmem>>, vector<1x128xf32>,
    %cst = arith.constant 0.000000e+00 : f32
    %6 = vector.broadcast %cst : f32 to vector<32x128xf32>
    %c0_8 = arith.constant 0 : index
    %c124 = arith.constant 124 : index
    %7 = vector.load %arg7[%c0_8, %c124] : memref<1x256xf32, #tpu.memory_space<vmem>>, vector<1x128xf32>
    %c0_9 = arith.constant 0 : index
    %c0_10 = arith.constant 0 : index
    %c0_11 = arith.constant 0 : index
    %8 = vector.load %arg2[%c0_9, %c0_10, %c0_11] : memref<5x32x1xf32, #tpu.memory_space<vmem>>, vector<1x32x1xf32>
    %9 = vector.shape_cast %8 : vector<1x32x1xf32> to vector<32x1xf32>
    %10 = vector.broadcast %9 : vector<32x1xf32> to vector<32x128xf32>
    %11 = vector.broadcast %7 : vector<1x128xf32> to vector<32x128xf32>
    %12 = arith.mulf %10, %11 : vector<32x128xf32>
    %13 = arith.addf %6, %12 : vector<32x128xf32>
    %c0_12 = arith.constant 0 : index
    %c125 = arith.constant 125 : index
    %14 = vector.load %arg7[%c0_12, %c125] : memref<1x256xf32, #tpu.memory_space<vmem>>, vector<1x128xf32>
    %c1 = arith.constant 1 : index
    %c0_13 = arith.constant 0 : index
    %c0_14 = arith.constant 0 : index
    %15 = vector.load %arg2[%c1, %c0_13, %c0_14] : memref<5x32x1xf32, #tpu.memory_space<vmem>>, vector<1x32x1xf32>
    %16 = vector.shape_cast %15 : vector<1x32x1xf32> to vector<32x1xf32>
    %17 = vector.broadcast %16 : vector<32x1xf32> to vector<32x128xf32>
    %18 = vector.broadcast %14 : vector<1x128xf32> to vector<32x128xf32>
    %19 = arith.mulf %17, %18 : vector<32x128xf32>
    %20 = arith.addf %13, %19 : vector<32x128xf32>
    %c0_15 = arith.constant 0 : index
    %c126 = arith.constant 126 : index
    %21 = vector.load %arg7[%c0_15, %c126] : memref<1x256xf32, #tpu.memory_space<vmem>>, vector<1x128xf32>
    %c2 = arith.constant 2 : index
    %c0_16 = arith.constant 0 : index
    %c0_17 = arith.constant 0 : index
    %22 = vector.load %arg2[%c2, %c0_16, %c0_17] : memref<5x32x1xf32, #tpu.memory_space<vmem>>, vector<1x32x1xf32>
    %23 = vector.shape_cast %22 : vector<1x32x1xf32> to vector<32x1xf32>
    %24 = vector.broadcast %23 : vector<32x1xf32> to vector<32x128xf32>
    %25 = vector.broadcast %21 : vector<1x128xf32> to vector<32x128xf32>
    %26 = arith.mulf %24, %25 : vector<32x128xf32>
    %27 = arith.addf %20, %26 : vector<32x128xf32>
    %c0_18 = arith.constant 0 : index
    %c127 = arith.constant 127 : index
    %28 = vector.load %arg7[%c0_18, %c127] : memref<1x256xf32, #tpu.memory_space<vmem>>, vector<1x128xf32>
    %c3 = arith.constant 3 : index
    %c0_19 = arith.constant 0 : index
    %c0_20 = arith.constant 0 : index
    %29 = vector.load %arg2[%c3, %c0_19, %c0_20] : memref<5x32x1xf32, #tpu.memory_space<vmem>>, vector<1x32x1xf32>
    %30 = vector.shape_cast %29 : vector<1x32x1xf32> to vector<32x1xf32>
    %31 = vector.broadcast %30 : vector<32x1xf32> to vector<32x128xf32>
    %32 = vector.broadcast %28 : vector<1x128xf32> to vector<32x128xf32>
    %33 = arith.mulf %31, %32 : vector<32x128xf32>
    %34 = arith.addf %27, %33 : vector<32x128xf32>
    %c0_21 = arith.constant 0 : index
    %c128_22 = arith.constant 128 : index
    %35 = vector.load %arg7[%c0_21, %c128_22] : memref<1x256xf32, #tpu.memory_space<vmem>>, vector<1x128xf32>
    %c4 = arith.constant 4 : index
    %c0_23 = arith.constant 0 : index
    %c0_24 = arith.constant 0 : index
    %36 = vector.load %arg2[%c4, %c0_23, %c0_24] : memref<5x32x1xf32, #tpu.memory_space<vmem>>, vector<1x32x1xf32>
    %37 = vector.shape_cast %36 : vector<1x32x1xf32> to vector<32x1xf32>
    %38 = vector.broadcast %37 : vector<32x1xf32> to vector<32x128xf32>
    %39 = vector.broadcast %35 : vector<1x128xf32> to vector<32x128xf32>
    %40 = arith.mulf %38, %39 : vector<32x128xf32>
    %41 = arith.addf %34, %40 : vector<32x128xf32>
    %c0_25 = arith.constant 0 : index
    %c0_26 = arith.constant 0 : index
    %42 = vector.load %arg3[%c0_25, %c0_26] : memref<32x1xf32, #tpu.memory_space<vmem>>, vector<32x1xf32>
    %43 = vector.broadcast %42 : vector<32x1xf32> to vector<32x128xf32>
    %44 = arith.addf %41, %43 : vector<32x128xf32>
    %45 = math.tanh %44 : vector<32x128xf32>
    %c0_27 = arith.constant 0 : index
    %c0_28 = arith.constant 0 : index
    %c0_29 = arith.constant 0 : index
    %46 = vector.load %arg6[%c0_27, %c0_28, %c0_29] : memref<1x32x128xf32, #tpu.memory_space<vmem>>, vector<1x32x128xf32>
    %47 = vector.shape_cast %46 : vector<1x32x128xf32> to vector<32x128xf32>
    %48 = vector.shape_cast %45 : vector<32x128xf32> to vector<1x32x128xf32>
    tpu.vector_store %arg6[%c0_27, %c0_28, %c0_29], %48 {strides = array<i32>} : memref<1x32x128xf32, #tpu.memory_space<vmem>>, vector<1x32x128xf32>,
    return
  }
  func.func @transform_0(%arg0: i32, %arg1: i32) -> (i32, i32, i32) {
    %c0_i32 = arith.constant 0 : i32
    %c0_i32_0 = arith.constant 0 : i32
    %c0_i32_1 = arith.constant 0 : i32
    %c0_i32_2 = arith.constant 0 : i32
    return %c0_i32, %c0_i32_0, %c0_i32_1 : i32, i32, i32
  }
  func.func @transform_1(%arg0: i32, %arg1: i32) -> (i32, i32) {
    %c0_i32 = arith.constant 0 : i32
    %c0_i32_0 = arith.constant 0 : i32
    %c0_i32_1 = arith.constant 0 : i32
    return %c0_i32, %c0_i32_0 : i32, i32
  }
  func.func @transform_2(%arg0: i32, %arg1: i32) -> (i32, i32, i32) {
    %c0_i32 = arith.constant 0 : i32
    %c0_i32_0 = arith.constant 0 : i32
    return %arg0, %c0_i32, %arg1 : i32, i32, i32
  }
  func.func @transform_3(%arg0: i32, %arg1: i32) -> (i32, i32, i32) {
    %c0_i32 = arith.constant 0 : i32
    %c0_i32_0 = arith.constant 0 : i32
    return %arg0, %c0_i32, %arg1 : i32, i32, i32
  }
  func.func @transform_4(%arg0: i32, %arg1: i32) -> (i32, i32, i32) {
    %c0_i32 = arith.constant 0 : i32
    %c0_i32_0 = arith.constant 0 : i32
    return %arg0, %c0_i32, %arg1 : i32, i32, i32
  }
}

</mosaic_0001>

<llo_original>
// kernel: tpu_custom_call.1
$region0: #{tpu_custom_call.1}
  #allocation0 [shape = 'u32[]', space=smem, size = 0x4, offset = 0x4, fixed_abs, tag = 'smem constant byte address 0x4 - core index']
  #allocation1 [shape = 'u32[144,128]{1,0:T(1,128)}', space=vmem, size = 0x12000, scoped, tag = 'internal scratch']
  #allocation2 [shape = 'f32[1,256]{1,0:T(1,128)}', space=vmem, size = 0x400, scoped, tag = 'scratch operand']
  %s0 = inlined_call_operand.vmem [shape: f32[5,32,1], index: 0, kind: input, shape index: {}]
  %s1 = inlined_call_operand.vmem [shape: f32[32,1], index: 1, kind: input, shape index: {}]
  %s2 = inlined_call_operand.vmem [shape: f32[2,1,128], index: 2, kind: input, shape index: {}]
  %s3 = inlined_call_operand.vmem [shape: f32[2,1,128], index: 3, kind: input, shape index: {}]
  %s4 = inlined_call_operand.hbm [shape: f32[2,32,128], index: 4, kind: output, shape index: {}]
  %s5 = sld [smem:[#allocation0]]
  $region49: #{tpu_custom_call.1} parent=0
    _
  %s7 = ssub.s32 1, %s5
  %s8 = scalar_select 0, %s7, %s5
  $region1: #{tpu_custom_call.1} parent=0
    #allocation3 [shape = 'u8[32768]{0}', space=vmem, size = 0x8000, scoped, tag = 'output window, operand 0']
    #allocation4 [shape = 's32[2]{0}', space=sflag, size = 0x8, scoped, tag = 'scoped memory for tpu_custom_call.1']
    %9 = vsyncpa [#allocation4], 0
    %s10 = scalar_lea.sflag [#allocation4], 1
    %11 = vsyncpa %s10, 0
    loop: start=0, step=1, limit=4
    $region2: #{tpu_custom_call.1} parent=1 // loop_pre_header
      _
    $region3: #{tpu_custom_call.1} parent=1 // loop_header
      %s13 = sphi 0, %s17
      %p14 = scmp.ge.s32.totalorder %s13, 4
      %s20 = sphi 0, %s32
      %s21 = sphi 0, %s28
      %s22 = sphi 0, %s20
      %s23 = sphi 0, %s21
      %s24 = sphi 0, %s22
      %s25 = sphi 0, %s23
      %s33 = sphi 0, %s33
      %s35 = sphi 0, %s33
      %s36 = sphi 0, %s35
      %s50 = sphi 0, %s36
      %s54 = sphi 0, %s54
      %s56 = sphi 0, %s54
      %s57 = sphi 0, %s56
      %s71 = sphi 0, %s57
      %s79 = sphi 0, %s81
      %s82 = sphi 0, %s79
      %s83 = sphi 0, %s82
      %s99 = sphi 0, %s83
      %s107 = sphi 0, %s109
      %s110 = sphi 0, %s107
      %s111 = sphi 0, %s110
      %s127 = sphi 0, %s111
      %s135 = sphi 0, %s137
      %s138 = sphi 0, %s135
      %s139 = sphi 0, %s138
      %s155 = sphi 0, %s139
    $region4: #{tpu_custom_call.1} parent=1 // loop_header_branch
      %16 = sbr.rel (%p14) target = $region8
    $region5: #{tpu_custom_call.1} parent=1 // loop_body
      %s18 = ssub.s32 %s13, 1
      %s19 = ssub.s32 %s13, 2
      %s26 = sadd.s32 1, %s21
      %p27 = scmp.ge.s32.totalorder %s26, 1
      %s28 = scalar_select %p27, 0, %s26
      %s29 = sadd.s32 1, %s20
      %s30 = scalar_select %p27, %s29, %s20
      %p31 = scmp.ge.s32.totalorder %s30, 2
      %s32 = scalar_select %p31, 0, %s30
      %s34 = sadd.s32 %s33, 1
      %p37 = scmp.eq.s32.totalorder %s13, 1
      %p38 = scmp.ne.s32.totalorder %s33, %s35
      %p39 = scmp.eq.s32.totalorder %s13, 0
      %p40 = por %p38, %p39
      %p41 = scmp.ne.s32.totalorder %s33, %s35
      %p42 = scmp.eq.s32.totalorder %s18, 1
      %p43 = por %p41, %p42
      %p44 = scmp.ne.s32.totalorder %s35, %s36
      %p45 = scmp.eq.s32.totalorder %s18, 0
      %p46 = por %p44, %p45
      %p47 = scmp.ne.s32.totalorder %s35, %s36
      %p48 = scmp.eq.s32.totalorder %s19, 1
      %p49 = por %p47, %p48
      %p51 = scmp.ne.s32.totalorder %s36, %s50
      %p52 = scmp.eq.s32.totalorder %s19, 0
      %p53 = por %p51, %p52
      %s55 = sadd.s32 %s54, 1
      %p58 = scmp.eq.s32.totalorder %s13, 1
      %p59 = scmp.ne.s32.totalorder %s54, %s56
      %p60 = scmp.eq.s32.totalorder %s13, 0
      %p61 = por %p59, %p60
      %p62 = scmp.ne.s32.totalorder %s54, %s56
      %p63 = scmp.eq.s32.totalorder %s18, 1
      %p64 = por %p62, %p63
      %p65 = scmp.ne.s32.totalorder %s56, %s57
      %p66 = scmp.eq.s32.totalorder %s18, 0
      %p67 = por %p65, %p66
      %p68 = scmp.ne.s32.totalorder %s56, %s57
      %p69 = scmp.eq.s32.totalorder %s19, 1
      %p70 = por %p68, %p69
      %p72 = scmp.ne.s32.totalorder %s57, %s71
      %p73 = scmp.eq.s32.totalorder %s19, 0
      %p74 = por %p72, %p73
      %s75 = ssub.s32 %s20, %s32
      %s76 = ssub.s32 %s21, %s28
      %s77 = sor.u32 %s75, %s76
      %p78 = scmp.eq.s32.totalorder %s77, 0
      %s80 = sadd.s32 %s79, 1
      %s81 = scalar_select %p78, %s79, %s80
      %p84 = pneg %p78
      %p85 = scmp.eq.s32.totalorder %s13, 1
      %p86 = por %p84, %p85
      %p87 = scmp.ne.s32.totalorder %s79, %s82
      %p88 = scmp.eq.s32.totalorder %s13, 0
      %p89 = por %p87, %p88
      %p90 = scmp.ne.s32.totalorder %s79, %s82
      %p91 = scmp.eq.s32.totalorder %s18, 1
      %p92 = por %p90, %p91
      %p93 = scmp.ne.s32.totalorder %s82, %s83
      %p94 = scmp.eq.s32.totalorder %s18, 0
      %p95 = por %p93, %p94
      %p96 = scmp.ne.s32.totalorder %s82, %s83
      %p97 = scmp.eq.s32.totalorder %s19, 1
      %p98 = por %p96, %p97
      %p100 = scmp.ne.s32.totalorder %s83, %s99
      %p101 = scmp.eq.s32.totalorder %s19, 0
      %p102 = por %p100, %p101
      %s103 = ssub.s32 %s20, %s32
      %s104 = ssub.s32 %s21, %s28
      %s105 = sor.u32 %s103, %s104
      %p106 = scmp.eq.s32.totalorder %s105, 0
      %s108 = sadd.s32 %s107, 1
      %s109 = scalar_select %p106, %s107, %s108
      %p112 = pneg %p106
      %p113 = scmp.eq.s32.totalorder %s13, 1
      %p114 = por %p112, %p113
      %p115 = scmp.ne.s32.totalorder %s107, %s110
      %p116 = scmp.eq.s32.totalorder %s13, 0
      %p117 = por %p115, %p116
      %p118 = scmp.ne.s32.totalorder %s107, %s110
      %p119 = scmp.eq.s32.totalorder %s18, 1
      %p120 = por %p118, %p119
      %p121 = scmp.ne.s32.totalorder %s110, %s111
      %p122 = scmp.eq.s32.totalorder %s18, 0
      %p123 = por %p121, %p122
      %p124 = scmp.ne.s32.totalorder %s110, %s111
      %p125 = scmp.eq.s32.totalorder %s19, 1
      %p126 = por %p124, %p125
      %p128 = scmp.ne.s32.totalorder %s111, %s127
      %p129 = scmp.eq.s32.totalorder %s19, 0
      %p130 = por %p128, %p129
      %s131 = ssub.s32 %s20, %s32
      %s132 = ssub.s32 %s21, %s28
      %s133 = sor.u32 %s131, %s132
      %p134 = scmp.eq.s32.totalorder %s133, 0
      %s136 = sadd.s32 %s135, 1
      %s137 = scalar_select %p134, %s135, %s136
      %p140 = pneg %p134
      %p141 = scmp.eq.s32.totalorder %s13, 1
      %p142 = por %p140, %p141
      %p143 = scmp.ne.s32.totalorder %s135, %s138
      %p144 = scmp.eq.s32.totalorder %s13, 0
      %p145 = por %p143, %p144
      %p146 = scmp.ne.s32.totalorder %s135, %s138
      %p147 = scmp.eq.s32.totalorder %s18, 1
      %p148 = por %p146, %p147
      %p149 = scmp.ne.s32.totalorder %s138, %s139
      %p150 = scmp.eq.s32.totalorder %s18, 0
      %p151 = por %p149, %p150
      %p152 = scmp.ne.s32.totalorder %s138, %s139
      %p153 = scmp.eq.s32.totalorder %s19, 1
      %p154 = por %p152, %p153
      %p156 = scmp.ne.s32.totalorder %s139, %s155
      %p157 = scmp.eq.s32.totalorder %s19, 0
      %p158 = por %p156, %p157
      %p159 = scmp.le.s32.totalorder 1, %s13
      %p160 = scmp.lt.s32.totalorder %s13, 3
      %p161 = pnand %p159, %p160
      %p162 = pneg %p161
      // Predicated region
      $region9: #{tpu_custom_call.1} parent=5 // pred_check
        _
      $region10: #{tpu_custom_call.1} parent=5 // pred_check_branch
        %164 = sbr.rel (%p161) target = $region12
      $region11: #{tpu_custom_call.1} parent=5 // pred_region
        %s165 = ssub.s32 %s13, 1
        // Predicated region
        $region13: #{tpu_custom_call.1} parent=11 // pred_check
          %p166 = pneg %p46
        $region14: #{tpu_custom_call.1} parent=11 // pred_check_branch
          %168 = sbr.rel (%p166) target = $region16
        $region15: #{tpu_custom_call.1} parent=11 // pred_region
          _
        $region16: #{tpu_custom_call.1} parent=11 // pred_fallthru
          _
        // Predicated region
        $region17: #{tpu_custom_call.1} parent=11 // pred_check
          %p169 = pneg %p67
        $region18: #{tpu_custom_call.1} parent=11 // pred_check_branch
          %171 = sbr.rel (%p169) target = $region20
        $region19: #{tpu_custom_call.1} parent=11 // pred_region
          _
        $region20: #{tpu_custom_call.1} parent=11 // pred_fallthru
          _
      $region12: #{tpu_custom_call.1} parent=5 // pred_fallthru
        _
      %p172 = scmp.lt.s32.totalorder %s13, 2
      // Predicated region
      $region21: #{tpu_custom_call.1} parent=5 // pred_check
        %p173 = pneg %p172
      $region22: #{tpu_custom_call.1} parent=5 // pred_check_branch
        %175 = sbr.rel (%p173) target = $region24
      $region23: #{tpu_custom_call.1} parent=5 // pred_region
        // Predicated region
        $region25: #{tpu_custom_call.1} parent=23 // pred_check
          %p176 = pneg %p89
        $region26: #{tpu_custom_call.1} parent=23 // pred_check_branch
          %178 = sbr.rel (%p176) target = $region28
        $region27: #{tpu_custom_call.1} parent=23 // pred_region
          %p179 = scmp.lt.s32.totalorder %s20, 1
          %s180 = scalar_select %p179, %s20, 1
          %p181 = scmp.lt.s32.totalorder %s21, 0
          %s182 = scalar_select %p181, %s21, 0
          %s183 = sadd.s32 %s182, %s180
          %s184 = scalar_lea.vmem %s2, %s183
        $region28: #{tpu_custom_call.1} parent=23 // pred_fallthru
          _
        // Predicated region
        $region29: #{tpu_custom_call.1} parent=23 // pred_check
          %p185 = pneg %p117
        $region30: #{tpu_custom_call.1} parent=23 // pred_check_branch
          %187 = sbr.rel (%p185) target = $region32
        $region31: #{tpu_custom_call.1} parent=23 // pred_region
          %p188 = scmp.lt.s32.totalorder %s20, 1
          %s189 = scalar_select %p188, %s20, 1
          %p190 = scmp.lt.s32.totalorder %s21, 0
          %s191 = scalar_select %p190, %s21, 0
          %s192 = sadd.s32 %s191, %s189
          %s193 = scalar_lea.vmem %s3, %s192
        $region32: #{tpu_custom_call.1} parent=23 // pred_fallthru
          _
      $region24: #{tpu_custom_call.1} parent=5 // pred_fallthru
        _
      %p194 = scmp.le.s32.totalorder 1, %s13
      %p195 = scmp.lt.s32.totalorder %s13, 3
      %p196 = pnand %p194, %p195
      %p197 = pneg %p196
      // Predicated region
      $region33: #{tpu_custom_call.1} parent=5 // pred_check
        _
      $region34: #{tpu_custom_call.1} parent=5 // pred_check_branch
        %199 = sbr.rel (%p196) target = $region36
      $region35: #{tpu_custom_call.1} parent=5 // pred_region
        %s200 = ssub.s32 %s13, 1
        %p201 = pneg %p46
        %p202 = pneg %p43
        %p203 = pneg %p67
        %p204 = pneg %p64
        %p205 = scmp.lt.s32.totalorder %s22, 1
        %s206 = scalar_select %p205, %s22, 1
        %p207 = scmp.lt.s32.totalorder %s23, 0
        %s208 = scalar_select %p207, %s23, 0
        %s209 = sadd.s32 %s208, %s206
        %s210 = scalar_lea.vmem %s2, %s209
        %p211 = pneg %p95
        %p212 = pneg %p92
        %p213 = scmp.lt.s32.totalorder %s22, 1
        %s214 = scalar_select %p213, %s22, 1
        %p215 = scmp.lt.s32.totalorder %s23, 0
        %s216 = scalar_select %p215, %s23, 0
        %s217 = sadd.s32 %s216, %s214
        %s218 = scalar_lea.vmem %s3, %s217
        %p219 = pneg %p123
        %p220 = pneg %p120
        %p221 = pneg %p151
        %p222 = pneg %p148
        %s223 = sand.u32 %s138, 1
        %s224 = scalar_lea.sflag [#allocation4], %s223
        %s225 = sand.u32 %s138, 1
        %s226 = smul.addr %s225, 32
        %s227 = scalar_lea.vmem [#allocation3], %s226
        %p228 = scmp.lt.s32.totalorder %s22, 1
        %s229 = scalar_select %p228, %s22, 1
        %p230 = scmp.lt.s32.totalorder %s23, 0
        %s231 = scalar_select %p230, %s23, 0
        %s232 = sadd.s32 %s231, %s229
        %s233 = scalar_lea.vmem %s2, %s232
        %p234 = scmp.lt.s32.totalorder %s22, 1
        %s235 = scalar_select %p234, %s22, 1
        %p236 = scmp.lt.s32.totalorder %s23, 0
        %s237 = scalar_select %p236, %s23, 0
        %s238 = sadd.s32 %s237, %s235
        %s239 = scalar_lea.vmem %s3, %s238
        %v240 = vld [vmem:[%s239] sm:$0x1]
        %v241 = vlaneseq
        %vm242 = vcmp.ge.s32.totalorder %v241, 0
        %vm243 = vcmp.lt.s32.totalorder %v241, 128
        %vm244 = vmand %vm242, %vm243
        %245 = vst.msk [vmem:[#allocation2] sm:$0x1] %vm244, %v240
        %v246 = vld [vmem:[%s233] sm:$0x1]
        %247 = vst.msk [vmem:[#allocation2 + $0x1] sm:$0x1] %vm244, %v246
        %v248 = vld [vmem:[#allocation2] sm:$0x3]
        %v249 = vld [vmem:[%s0] sm:$0xff]
        %v250 = vld [vmem:[%s0 + $0x8] sm:$0xff]
        %v251 = vld [vmem:[%s0 + $0x10] sm:$0xff]
        %v252 = vld [vmem:[%s0 + $0x18] sm:$0xff]
        %254 = vset.pattern.permute.xlu0 0
        %255 = vperm.xlu0 %254, %v249
        %v256 = vpop.permute.xlu0 %255
        %259 = vset.pattern.permute.xlu0 0
        %260 = vperm.xlu0 %259, %v250
        %v261 = vpop.permute.xlu0 %260
        %264 = vset.pattern.permute.xlu0 0
        %265 = vperm.xlu0 %264, %v251
        %v266 = vpop.permute.xlu0 %265
        %269 = vset.pattern.permute.xlu0 0
        %270 = vperm.xlu0 %269, %v252
        %v271 = vpop.permute.xlu0 %270
        %v274 = vlaneseq
        %v275 = vshrl.u32 %v274, 7
        %v276 = vsub.s32 0, %v275
        %v277 = vrot.slane %v248, %v276
        %v278 = vlaneseq
        %v279 = vshrl.u32 %v278, 7
        %v280 = vsub.s32 1, %v279
        %v281 = vrot.slane %v248, %v280
        %v284 = vmul.f32 %v256, %v277
        %v285 = vmul.f32 %v256, %v281
        %v286 = vmul.f32 %v261, %v277
        %v287 = vmul.f32 %v261, %v281
        %v288 = vmul.f32 %v266, %v277
        %v289 = vmul.f32 %v266, %v281
        %v290 = vmul.f32 %v271, %v277
        %v291 = vmul.f32 %v271, %v281
        %v292 = vadd.f32 %v284, 0.0
        %v293 = vadd.f32 %v285, 0.0
        %v294 = vadd.f32 %v286, 0.0
        %v295 = vadd.f32 %v287, 0.0
        %v296 = vadd.f32 %v288, 0.0
        %v297 = vadd.f32 %v289, 0.0
        %v298 = vadd.f32 %v290, 0.0
        %v299 = vadd.f32 %v291, 0.0
        %s300 = scalar_lea.vmem %s0, 32
        %v301 = vld [vmem:[%s300] sm:$0xff]
        %v302 = vld [vmem:[%s300 + $0x8] sm:$0xff]
        %v303 = vld [vmem:[%s300 + $0x10] sm:$0xff]
        %v304 = vld [vmem:[%s300 + $0x18] sm:$0xff]
        %306 = vset.pattern.permute.xlu0 0
        %307 = vperm.xlu0 %306, %v301
        %v308 = vpop.permute.xlu0 %307
        %311 = vset.pattern.permute.xlu0 0
        %312 = vperm.xlu0 %311, %v302
        %v313 = vpop.permute.xlu0 %312
        %316 = vset.pattern.permute.xlu0 0
        %317 = vperm.xlu0 %316, %v303
        %v318 = vpop.permute.xlu0 %317
        %321 = vset.pattern.permute.xlu0 0
        %322 = vperm.xlu0 %321, %v304
        %v323 = vpop.permute.xlu0 %322
        %v325 = vmul.f32 %v308, %v277
        %v326 = vmul.f32 %v308, %v281
        %v327 = vmul.f32 %v313, %v277
        %v328 = vmul.f32 %v313, %v281
        %v329 = vmul.f32 %v318, %v277
        %v330 = vmul.f32 %v318, %v281
        %v331 = vmul.f32 %v323, %v277
        %v332 = vmul.f32 %v323, %v281
        %341 = vrot.lane.b32.xlu0 %v325, 127
        %v342 = vpop.permute.xlu0 %341
        %343 = vrot.lane.b32.xlu0 %v326, 127
        %v344 = vpop.permute.xlu0 %343
        %345 = vrot.lane.b32.xlu0 %v327, 127
        %v346 = vpop.permute.xlu0 %345
        %347 = vrot.lane.b32.xlu0 %v328, 127
        %v348 = vpop.permute.xlu0 %347
        %349 = vrot.lane.b32.xlu0 %v329, 127
        %v350 = vpop.permute.xlu0 %349
        %351 = vrot.lane.b32.xlu0 %v330, 127
        %v352 = vpop.permute.xlu0 %351
        %353 = vrot.lane.b32.xlu0 %v331, 127
        %v354 = vpop.permute.xlu0 %353
        %355 = vrot.lane.b32.xlu0 %v332, 127
        %v356 = vpop.permute.xlu0 %355
        %vm357 = vcmask 1039360
        %v358 = vsel %vm357, %v342, %v344
        %v359 = vsel %vm357, %v346, %v348
        %v360 = vsel %vm357, %v350, %v352
        %v361 = vsel %vm357, %v354, %v356
        %v370 = vadd.f32 %v292, %v358
        %v371 = vadd.f32 %v293, %v344
        %v372 = vadd.f32 %v294, %v359
        %v373 = vadd.f32 %v295, %v348
        %v374 = vadd.f32 %v296, %v360
        %v375 = vadd.f32 %v297, %v352
        %v376 = vadd.f32 %v298, %v361
        %v377 = vadd.f32 %v299, %v356
        %s378 = scalar_lea.vmem %s0, 64
        %v379 = vld [vmem:[%s378] sm:$0xff]
        %v380 = vld [vmem:[%s378 + $0x8] sm:$0xff]
        %v381 = vld [vmem:[%s378 + $0x10] sm:$0xff]
        %v382 = vld [vmem:[%s378 + $0x18] sm:$0xff]
        %384 = vset.pattern.permute.xlu0 0
        %385 = vperm.xlu0 %384, %v379
        %v386 = vpop.permute.xlu0 %385
        %389 = vset.pattern.permute.xlu0 0
        %390 = vperm.xlu0 %389, %v380
        %v391 = vpop.permute.xlu0 %390
        %394 = vset.pattern.permute.xlu0 0
        %395 = vperm.xlu0 %394, %v381
        %v396 = vpop.permute.xlu0 %395
        %399 = vset.pattern.permute.xlu0 0
        %400 = vperm.xlu0 %399, %v382
        %v401 = vpop.permute.xlu0 %400
        %v403 = vmul.f32 %v386, %v277
        %v404 = vmul.f32 %v386, %v281
        %v405 = vmul.f32 %v391, %v277
        %v406 = vmul.f32 %v391, %v281
        %v407 = vmul.f32 %v396, %v277
        %v408 = vmul.f32 %v396, %v281
        %v409 = vmul.f32 %v401, %v277
        %v410 = vmul.f32 %v401, %v281
        %419 = vrot.lane.b32.xlu0 %v403, 126
        %v420 = vpop.permute.xlu0 %419
        %421 = vrot.lane.b32.xlu0 %v404, 126
        %v422 = vpop.permute.xlu0 %421
        %423 = vrot.lane.b32.xlu0 %v405, 126
        %v424 = vpop.permute.xlu0 %423
        %425 = vrot.lane.b32.xlu0 %v406, 126
        %v426 = vpop.permute.xlu0 %425
        %427 = vrot.lane.b32.xlu0 %v407, 126
        %v428 = vpop.permute.xlu0 %427
        %429 = vrot.lane.b32.xlu0 %v408, 126
        %v430 = vpop.permute.xlu0 %429
        %431 = vrot.lane.b32.xlu0 %v409, 126
        %v432 = vpop.permute.xlu0 %431
        %433 = vrot.lane.b32.xlu0 %v410, 126
        %v434 = vpop.permute.xlu0 %433
        %vm435 = vcmask 1031168
        %v436 = vsel %vm435, %v420, %v422
        %v437 = vsel %vm435, %v424, %v426
        %v438 = vsel %vm435, %v428, %v430
        %v439 = vsel %vm435, %v432, %v434
        %v448 = vadd.f32 %v370, %v436
        %v449 = vadd.f32 %v371, %v422
        %v450 = vadd.f32 %v372, %v437
        %v451 = vadd.f32 %v373, %v426
        %v452 = vadd.f32 %v374, %v438
        %v453 = vadd.f32 %v375, %v430
        %v454 = vadd.f32 %v376, %v439
        %v455 = vadd.f32 %v377, %v434
        %s456 = scalar_lea.vmem %s0, 96
        %v457 = vld [vmem:[%s456] sm:$0xff]
        %v458 = vld [vmem:[%s456 + $0x8] sm:$0xff]
        %v459 = vld [vmem:[%s456 + $0x10] sm:$0xff]
        %v460 = vld [vmem:[%s456 + $0x18] sm:$0xff]
        %462 = vset.pattern.permute.xlu0 0
        %463 = vperm.xlu0 %462, %v457
        %v464 = vpop.permute.xlu0 %463
        %467 = vset.pattern.permute.xlu0 0
        %468 = vperm.xlu0 %467, %v458
        %v469 = vpop.permute.xlu0 %468
        %472 = vset.pattern.permute.xlu0 0
        %473 = vperm.xlu0 %472, %v459
        %v474 = vpop.permute.xlu0 %473
        %477 = vset.pattern.permute.xlu0 0
        %478 = vperm.xlu0 %477, %v460
        %v479 = vpop.permute.xlu0 %478
        %v481 = vmul.f32 %v464, %v277
        %v482 = vmul.f32 %v464, %v281
        %v483 = vmul.f32 %v469, %v277
        %v484 = vmul.f32 %v469, %v281
        %v485 = vmul.f32 %v474, %v277
        %v486 = vmul.f32 %v474, %v281
        %v487 = vmul.f32 %v479, %v277
        %v488 = vmul.f32 %v479, %v281
        %497 = vrot.lane.b32.xlu0 %v481, 125
        %v498 = vpop.permute.xlu0 %497
        %499 = vrot.lane.b32.xlu0 %v482, 125
        %v500 = vpop.permute.xlu0 %499
        %501 = vrot.lane.b32.xlu0 %v483, 125
        %v502 = vpop.permute.xlu0 %501
        %503 = vrot.lane.b32.xlu0 %v484, 125
        %v504 = vpop.permute.xlu0 %503
        %505 = vrot.lane.b32.xlu0 %v485, 125
        %v506 = vpop.permute.xlu0 %505
        %507 = vrot.lane.b32.xlu0 %v486, 125
        %v508 = vpop.permute.xlu0 %507
        %509 = vrot.lane.b32.xlu0 %v487, 125
        %v510 = vpop.permute.xlu0 %509
        %511 = vrot.lane.b32.xlu0 %v488, 125
        %v512 = vpop.permute.xlu0 %511
        %vm513 = vcmask 1022976
        %v514 = vsel %vm513, %v498, %v500
        %v515 = vsel %vm513, %v502, %v504
        %v516 = vsel %vm513, %v506, %v508
        %v517 = vsel %vm513, %v510, %v512
        %v526 = vadd.f32 %v448, %v514
        %v527 = vadd.f32 %v449, %v500
        %v528 = vadd.f32 %v450, %v515
        %v529 = vadd.f32 %v451, %v504
        %v530 = vadd.f32 %v452, %v516
        %v531 = vadd.f32 %v453, %v508
        %v532 = vadd.f32 %v454, %v517
        %v533 = vadd.f32 %v455, %v512
        %v534 = vld [vmem:[#allocation2 + $0x1] sm:$0x1]
        %s535 = scalar_lea.vmem %s0, 128
        %v536 = vld [vmem:[%s535] sm:$0xff]
        %v537 = vld [vmem:[%s535 + $0x8] sm:$0xff]
        %v538 = vld [vmem:[%s535 + $0x10] sm:$0xff]
        %v539 = vld [vmem:[%s535 + $0x18] sm:$0xff]
        %541 = vset.pattern.permute.xlu0 0
        %542 = vperm.xlu0 %541, %v536
        %v543 = vpop.permute.xlu0 %542
        %546 = vset.pattern.permute.xlu0 0
        %547 = vperm.xlu0 %546, %v537
        %v548 = vpop.permute.xlu0 %547
        %551 = vset.pattern.permute.xlu0 0
        %552 = vperm.xlu0 %551, %v538
        %v553 = vpop.permute.xlu0 %552
        %556 = vset.pattern.permute.xlu0 0
        %557 = vperm.xlu0 %556, %v539
        %v558 = vpop.permute.xlu0 %557
        %v561 = vlaneseq
        %v562 = vshrl.u32 %v561, 7
        %v563 = vsub.s32 0, %v562
        %v564 = vrot.slane %v534, %v563
        %v566 = vmul.f32 %v543, %v564
        %v567 = vmul.f32 %v548, %v564
        %v568 = vmul.f32 %v553, %v564
        %v569 = vmul.f32 %v558, %v564
        %574 = vrot.lane.b32.xlu0 %v566, 124
        %v575 = vpop.permute.xlu0 %574
        %576 = vrot.lane.b32.xlu0 %v567, 124
        %v577 = vpop.permute.xlu0 %576
        %578 = vrot.lane.b32.xlu0 %v568, 124
        %v579 = vpop.permute.xlu0 %578
        %580 = vrot.lane.b32.xlu0 %v569, 124
        %v581 = vpop.permute.xlu0 %580
        %v586 = vadd.f32 %v526, %v575
        %v587 = vadd.f32 %v527, %v575
        %v588 = vadd.f32 %v528, %v577
        %v589 = vadd.f32 %v529, %v577
        %v590 = vadd.f32 %v530, %v579
        %v591 = vadd.f32 %v531, %v579
        %v592 = vadd.f32 %v532, %v581
        %v593 = vadd.f32 %v533, %v581
        %v594 = vld [vmem:[%s1] sm:$0xff]
        %v595 = vld [vmem:[%s1 + $0x8] sm:$0xff]
        %v596 = vld [vmem:[%s1 + $0x10] sm:$0xff]
        %v597 = vld [vmem:[%s1 + $0x18] sm:$0xff]
        %599 = vset.pattern.permute.xlu0 0
        %600 = vperm.xlu0 %599, %v594
        %v601 = vpop.permute.xlu0 %600
        %604 = vset.pattern.permute.xlu0 0
        %605 = vperm.xlu0 %604, %v595
        %v606 = vpop.permute.xlu0 %605
        %609 = vset.pattern.permute.xlu0 0
        %610 = vperm.xlu0 %609, %v596
        %v611 = vpop.permute.xlu0 %610
        %614 = vset.pattern.permute.xlu0 0
        %615 = vperm.xlu0 %614, %v597
        %v616 = vpop.permute.xlu0 %615
        %v618 = vadd.f32 %v586, %v601
        %v619 = vadd.f32 %v587, %v601
        %v620 = vadd.f32 %v588, %v606
        %v621 = vadd.f32 %v589, %v606
        %v622 = vadd.f32 %v590, %v611
        %v623 = vadd.f32 %v591, %v611
        %v624 = vadd.f32 %v592, %v616
        %v625 = vadd.f32 %v593, %v616
        %v626 = vtanh.pop %v618
        %v627 = vtanh.pop %v619
        %v628 = vtanh.pop %v620
        %v629 = vtanh.pop %v621
        %v630 = vtanh.pop %v622
        %v631 = vtanh.pop %v623
        %v632 = vtanh.pop %v624
        %v633 = vtanh.pop %v625
        %642 = vrot.lane.b32.xlu0 %v626, 4
        %v643 = vpop.permute.xlu0 %642
        %644 = vrot.lane.b32.xlu0 %v627, 4
        %v645 = vpop.permute.xlu0 %644
        %646 = vrot.lane.b32.xlu0 %v628, 4
        %v647 = vpop.permute.xlu0 %646
        %648 = vrot.lane.b32.xlu0 %v629, 4
        %v649 = vpop.permute.xlu0 %648
        %650 = vrot.lane.b32.xlu0 %v630, 4
        %v651 = vpop.permute.xlu0 %650
        %652 = vrot.lane.b32.xlu0 %v631, 4
        %v653 = vpop.permute.xlu0 %652
        %654 = vrot.lane.b32.xlu0 %v632, 4
        %v655 = vpop.permute.xlu0 %654
        %656 = vrot.lane.b32.xlu0 %v633, 4
        %v657 = vpop.permute.xlu0 %656
        %vm658 = vcmask 31744
        %v659 = vsel %vm658, %v643, %v645
        %v660 = vsel %vm658, %v647, %v649
        %v661 = vsel %vm658, %v651, %v653
        %v662 = vsel %vm658, %v655, %v657
        %667 = vst [vmem:[%s227] sm:$0xff] %v659
        %668 = vst [vmem:[%s227 + $0x8] sm:$0xff] %v660
        %669 = vst [vmem:[%s227 + $0x10] sm:$0xff] %v661
        %670 = vst [vmem:[%s227 + $0x18] sm:$0xff] %v662
        %s671 = sand.u32 %s138, 1
        %s672 = scalar_lea.sflag [#allocation4], %s671
        %s673 = sand.u32 %s138, 1
        %s674 = smul.addr %s673, 32
        %s675 = scalar_lea.vmem [#allocation3], %s674
        // Predicated region
        $region37: #{tpu_custom_call.1} parent=35 // pred_check
          %p676 = pneg %p148
        $region38: #{tpu_custom_call.1} parent=35 // pred_check_branch
          %678 = sbr.rel (%p676) target = $region40
        $region39: #{tpu_custom_call.1} parent=35 // pred_region
          %s680 = ssub.s32 512, 512
          %681 = vsyncadd %s672, %s680
          %s682 = smul.addr %s22, 4
          %s683 = sadd.s32 %s23, %s682
          %s684 = smul.addr %s683, 128
          %s685 = scalar_lea.hbm %s4, %s684
          %s686 = sshll.u32 %s675, 4
          %s687 = int_to_ptr.vmem [resolvable:$true] %s686
          %692 = dma.vmem_to_hbm [thread:$0]  %s687, 512, %s685, %s672, 128, 128, 8
        $region40: #{tpu_custom_call.1} parent=35 // pred_fallthru
          _
      $region36: #{tpu_custom_call.1} parent=5 // pred_fallthru
        _
      %p693 = scmp.le.s32.totalorder 2, %s13
      // Predicated region
      $region41: #{tpu_custom_call.1} parent=5 // pred_check
        %p694 = pneg %p693
      $region42: #{tpu_custom_call.1} parent=5 // pred_check_branch
        %696 = sbr.rel (%p694) target = $region44
      $region43: #{tpu_custom_call.1} parent=5 // pred_region
        %s697 = ssub.s32 %s13, 2
        // Predicated region
        $region45: #{tpu_custom_call.1} parent=43 // pred_check
          %p698 = pneg %p154
        $region46: #{tpu_custom_call.1} parent=43 // pred_check_branch
          %700 = sbr.rel (%p698) target = $region48
        $region47: #{tpu_custom_call.1} parent=43 // pred_region
          %s701 = sand.u32 %s139, 1
          %s702 = scalar_lea.sflag [#allocation4], %s701
          %s703 = sand.u32 %s139, 1
          %s704 = smul.addr %s703, 32
          %s705 = scalar_lea.vmem [#allocation3], %s704
          %706 = dma.done %s702, 512
        $region48: #{tpu_custom_call.1} parent=43 // pred_fallthru
          _
      $region44: #{tpu_custom_call.1} parent=5 // pred_fallthru
        _
    $region6: #{tpu_custom_call.1} parent=1 // loop_footer
      %s17 = sadd.s32 1, %s13
    $region7: #{tpu_custom_call.1} parent=1 // loop_footer_branch
      %12 = sbr.rel target = $region3
    $region8: #{tpu_custom_call.1} parent=1 // loop_exit
      _
    %707 = vsyncpa [#allocation4], 1
    %s708 = scalar_lea.sflag [#allocation4], 1
    %709 = vsyncpa %s708, 1

</llo_original>
